<compile_context>
chip_gen: v6e
topology: v6e:2x2x1
jax: 0.10.0
libtpu: 0.0.40
codegen_flags: <defaults>
</compile_context>

<pallas_src>
import functools

import jax
import jax.numpy as jnp
from jax import lax
from jax.experimental import pallas as pl
from jax.experimental.pallas import tpu as pltpu

TOP_N = 4        # number of neighbours to keep (module's `n`)
OUT_DIM = 32     # module's `out_dim`
IN_DIM = 4       # [rel_x, rel_y, rel_vx, rel_vy]  (no_vel = False)
EMB_DIM = OUT_DIM // TOP_N

_INT32_MAX = 2147483647


def _round_up(x, m):
    return ((x + m - 1) // m) * m


def nn_pooling_kernel(post_ref, pos_ref, rhs_ref, b_ref, out_ref, *,
                      top_n, tm, n_real, idx_bits):
    """One ego-row tile: select top_n nearest neighbours and embed them.

    post_ref: (2, N_pad)              neighbour x/y as lane rows (full)
    pos_ref : (TM, 2)                 ego x/y for this row tile
    rhs_ref : ((top_n+1)*N_pad, D)    block-diag [PW]*top_n + ego PW block
    b_ref   : (1, D)                  bias tiled per slot
    out_ref : (TM, D)                 D = top_n * emb_dim
    """
    n_pad = post_ref.shape[1]

    px_r = post_ref[0:1, :]            # (1, N_pad)  neighbour x
    py_r = post_ref[1:2, :]            # (1, N_pad)  neighbour y
    pos = pos_ref[...]                 # (TM, 2)     ego positions
    px_c = pos[:, 0:1]                 # (TM, 1)
    py_c = pos[:, 1:2]

    dx = px_r - px_c                   # (TM, N_pad)
    dy = py_r - py_c
    d2 = dx * dx + dy * dy             # squared distance (argmin-equivalent, no sqrt)

    col = lax.broadcasted_iota(jnp.int32, (tm, n_pad), 1)
    row = tm * pl.program_id(0) + lax.broadcasted_iota(jnp.int32, (tm, n_pad), 0)

    # Monotone packed key: high bits = bitcast of the non-negative squared
    # distance (low idx_bits of mantissa cleared), low bits = column index.
    # A single jnp.min then does argmin with lowest-index tie-break.
    idx_mask = (1 << idx_bits) - 1
    key = (lax.bitcast_convert_type(d2, jnp.int32) & ~idx_mask) | col
    key = jnp.where((row == col) | (col >= n_real), _INT32_MAX, key)

    sel_blocks = []
    for _ in range(top_n):
        mkey = jnp.min(key, axis=1, keepdims=True)   # (TM, 1) one XLU reduce / k
        onehot = key == mkey                          # exactly one True per row
        sel_blocks.append(onehot.astype(jnp.float32))
        key = jnp.where(onehot, _INT32_MAX, key)      # mask chosen neighbour out

    # Ego block with weight -1 so the single matmul also subtracts PW[ego].
    sel_blocks.append(-(col == row).astype(jnp.float32))
    sel = jnp.concatenate(sel_blocks, axis=1)         # (TM, (top_n+1)*N_pad)

    emb = jnp.dot(sel, rhs_ref[...], preferred_element_type=jnp.float32) + b_ref[...]
    out_ref[...] = jnp.maximum(emb, 0.0).astype(out_ref.dtype)


def nn_pooling_forward(obs1, obs2, W, b, *, top_n=TOP_N, out_dim=OUT_DIM):
    """Pallas implementation of NN_Pooling.forward(None, obs1, obs2)."""
    N = obs2.shape[0]
    assert out_dim % top_n == 0
    emb_dim = out_dim // top_n
    # TODO(synk): the zero-padding branch of NN_Pooling.dist (fewer than
    # `top_n` neighbours, i.e. N-1 < n) is not implemented in the kernel.
    assert N - 1 >= top_n, "kernel requires at least top_n neighbours"

    obs1 = obs1.astype(jnp.float32)
    obs2 = obs2.astype(jnp.float32)
    vel = obs2 - obs1
    P = jnp.concatenate([obs2, vel], axis=1)          # (N, 4) = [px, py, vx, vy]
    PW = jnp.dot(P, W)                                # (N, emb_dim)

    # Row tiling over ego pedestrians; pad N up so the grid divides evenly.
    tm = 128 if N > 128 else _round_up(N, 8)
    n_pad = _round_up(N, tm)
    pad = n_pad - N
    pos = jnp.pad(obs2, ((0, pad), (0, 0)))           # (N_pad, 2)
    pw_pad = jnp.pad(PW, ((0, pad), (0, 0)))          # (N_pad, emb_dim)
    post = jnp.transpose(pos)                         # (2, N_pad)  neighbour rows

    # Block-diagonal RHS: [PW]*top_n on the diagonal, plus a trailing ego block
    # (PW tiled across all slots) that the kernel hits with weight -1.
    # Pure layout plumbing, built once in the wrapper.
    zeros = jnp.zeros((n_pad, emb_dim), jnp.float32)
    blocks = []
    for k in range(top_n):
        row_blocks = [zeros] * top_n
        row_blocks[k] = pw_pad
        blocks.append(jnp.concatenate(row_blocks, axis=1))
    blocks.append(jnp.tile(pw_pad, (1, top_n)))
    rhs = jnp.concatenate(blocks, axis=0)             # ((top_n+1)*N_pad, out_dim)
    b_row = jnp.tile(b.reshape(1, emb_dim), (1, top_n))  # (1, out_dim)

    idx_bits = max(1, (n_pad - 1).bit_length())
    kernel = functools.partial(nn_pooling_kernel, top_n=top_n, tm=tm,
                               n_real=N, idx_bits=idx_bits)

    out = pl.pallas_call(
        kernel,
        out_shape=jax.ShapeDtypeStruct((n_pad, out_dim), jnp.float32),
        grid=(n_pad // tm,),
        in_specs=[
            pl.BlockSpec((2, n_pad), lambda i: (0, 0)),
            pl.BlockSpec((tm, 2), lambda i: (i, 0)),
            pl.BlockSpec(((top_n + 1) * n_pad, out_dim), lambda i: (0, 0)),
            pl.BlockSpec((1, out_dim), lambda i: (0, 0)),
        ],
        out_specs=pl.BlockSpec((tm, out_dim), lambda i: (i, 0)),
        compiler_params=pltpu.CompilerParams(
            dimension_semantics=("parallel",),
            vmem_limit_bytes=48 * 1024 * 1024,
        ),
    )(post, pos, rhs, b_row)
    return out[:N]


def nn_pooling_reference(obs1, obs2, W, b, *, top_n=TOP_N):
    """Pure-JAX reference mirroring the PyTorch forward."""
    N = obs2.shape[0]
    big = 1e30
    vel = obs2 - obs1
    rel_pos = obs2[None, :, :] - obs2[:, None, :]     # [i, j] = obs2[j] - obs2[i]
    rel_vel = vel[None, :, :] - vel[:, None, :]
    dist = jnp.sqrt(jnp.sum(rel_pos * rel_pos, axis=-1))
    dist = jnp.where(jnp.eye(N, dtype=bool), big, dist)
    _, idx = lax.top_k(-dist, top_n)                  # nearest first
    np_sel = jnp.take_along_axis(rel_pos, idx[..., None], axis=1)  # (N, top_n, 2)
    nv_sel = jnp.take_along_axis(rel_vel, idx[..., None], axis=1)
    feat = jnp.concatenate([np_sel, nv_sel], axis=-1)              # (N, top_n, 4)
    emb = jnp.maximum(jnp.einsum("nkd,de->nke", feat, W) + b.reshape(-1), 0.0)
    return emb.reshape(N, -1)


if __name__ == "__main__":
    key = jax.random.PRNGKey(0)
    k1, k2, k3, k4 = jax.random.split(key, 4)

    N = 8  # number of pedestrians in the scene
    obs1 = jax.random.normal(k1, (N, 2), jnp.float32)               # positions at t-1
    obs2 = obs1 + 0.1 * jax.random.normal(k2, (N, 2), jnp.float32)  # positions at t

    # Deterministic Linear(4 -> 8) params (torch default uniform bounds).
    bound = 1.0 / (IN_DIM ** 0.5)
    W = jax.random.uniform(k3, (IN_DIM, EMB_DIM), jnp.float32, -bound, bound)
    b = jax.random.uniform(k4, (1, EMB_DIM), jnp.float32, -bound, bound)

    out = nn_pooling_forward(obs1, obs2, W, b)
    out = jax.block_until_ready(out)

    ref = nn_pooling_reference(obs1, obs2, W, b)
    assert out.shape == (N, OUT_DIM), out.shape
    assert jnp.allclose(out, ref, atol=1e-4, rtol=1e-4), (out, ref)

    print("KERNEL_OK")
</pallas_src>

<mosaic_0001>
module attributes {stable_mosaic.version = 11 : i64} {
  func.func @nn_pooling_kernel(%arg0: i32, %arg1: memref<2x8xf32, #tpu.memory_space<vmem>>, %arg2: memref<8x2xf32, #tpu.memory_space<vmem>>, %arg3: memref<40x32xf32, #tpu.memory_space<vmem>>, %arg4: memref<1x32xf32, #tpu.memory_space<vmem>>, %arg5: memref<8x32xf32, #tpu.memory_space<vmem>>) attributes {dimension_semantics = [#tpu.dimension_semantics<parallel>], iteration_bounds = array<i64: 1>, scalar_prefetch = 0 : i64, scratch_operands = 0 : i64, tpu.core_type = #tpu.core_type<tc>, window_params = [{pipeline_mode = #tpu.pipeline_mode<synchronous>, transform_indices = @transform_0, window_bounds = array<i64: 2, 8>}, {transform_indices = @transform_1, window_bounds = array<i64: 8, 2>}, {pipeline_mode = #tpu.pipeline_mode<synchronous>, transform_indices = @transform_2, window_bounds = array<i64: 40, 32>}, {pipeline_mode = #tpu.pipeline_mode<synchronous>, transform_indices = @transform_3, window_bounds = array<i64: 1, 32>}, {transform_indices = @transform_4, window_bounds = array<i64: 8, 32>}]} {
    %c0 = arith.constant 0 : index
    %c0_0 = arith.constant 0 : index
    %0 = vector.load %arg1[%c0, %c0_0] : memref<2x8xf32, #tpu.memory_space<vmem>>, vector<1x8xf32>
    %c1 = arith.constant 1 : index
    %c0_1 = arith.constant 0 : index
    %1 = vector.load %arg1[%c1, %c0_1] : memref<2x8xf32, #tpu.memory_space<vmem>>, vector<1x8xf32>
    %c0_2 = arith.constant 0 : index
    %c0_3 = arith.constant 0 : index
    %2 = vector.load %arg2[%c0_2, %c0_3] : memref<8x2xf32, #tpu.memory_space<vmem>>, vector<8x2xf32>
    %3 = vector.extract_strided_slice %2 {offsets = [0, 0], sizes = [8, 1], strides = [1, 1]} : vector<8x2xf32> to vector<8x1xf32>
    %4 = vector.extract_strided_slice %2 {offsets = [0, 1], sizes = [8, 1], strides = [1, 1]} : vector<8x2xf32> to vector<8x1xf32>
    %5 = vector.broadcast %0 : vector<1x8xf32> to vector<8x8xf32>
    %6 = vector.broadcast %3 : vector<8x1xf32> to vector<8x8xf32>
    %7 = arith.subf %5, %6 : vector<8x8xf32>
    %8 = vector.broadcast %1 : vector<1x8xf32> to vector<8x8xf32>
    %9 = vector.broadcast %4 : vector<8x1xf32> to vector<8x8xf32>
    %10 = arith.subf %8, %9 : vector<8x8xf32>
    %11 = arith.mulf %7, %7 : vector<8x8xf32>
    %12 = arith.mulf %10, %10 : vector<8x8xf32>
    %13 = arith.addf %11, %12 : vector<8x8xf32>
    %14 = tpu.iota {dimensions = array<i32: 1>} : vector<8x8xi32>
    %c8_i32 = arith.constant 8 : i32
    %15 = arith.muli %c8_i32, %arg0 : i32
    %16 = tpu.iota {dimensions = array<i32: 0>} : vector<8x8xi32>
    %17 = vector.broadcast %15 : i32 to vector<8x8xi32>
    %18 = arith.addi %17, %16 : vector<8x8xi32>
    %19 = tpu.bitcast %13 : vector<8x8xf32> -> vector<8x8xi32>
    %c-8_i32 = arith.constant -8 : i32
    %20 = vector.broadcast %c-8_i32 : i32 to vector<8x8xi32>
    %21 = arith.andi %19, %20 : vector<8x8xi32>
    %22 = arith.ori %21, %14 : vector<8x8xi32>
    %23 = arith.cmpi eq, %18, %14 : vector<8x8xi32>
    %c8_i32_4 = arith.constant 8 : i32
    %24 = vector.broadcast %c8_i32_4 : i32 to vector<8x8xi32>
    %25 = arith.cmpi sge, %14, %24 : vector<8x8xi32>
    %26 = arith.ori %23, %25 : vector<8x8xi1>
    %c2147483647_i32 = arith.constant 2147483647 : i32
    %27 = vector.broadcast %c2147483647_i32 : i32 to vector<8x8xi32>
    %28 = arith.select %26, %27, %22 : vector<8x8xi1>, vector<8x8xi32>
    %cst = arith.constant dense<2147483647> : vector<8xi32>
    %29 = vector.multi_reduction <minsi>, %28, %cst [1] : vector<8x8xi32> to vector<8xi32>
    %30 = vector.shape_cast %29 : vector<8xi32> to vector<8x1xi32>
    %31 = vector.broadcast %30 : vector<8x1xi32> to vector<8x8xi32>
    %32 = arith.cmpi eq, %28, %31 : vector<8x8xi32>
    %33 = arith.extui %32 : vector<8x8xi1> to vector<8x8xi32>
    %34 = arith.sitofp %33 : vector<8x8xi32> to vector<8x8xf32>
    %c2147483647_i32_5 = arith.constant 2147483647 : i32
    %35 = vector.broadcast %c2147483647_i32_5 : i32 to vector<8x8xi32>
    %36 = arith.select %32, %35, %28 : vector<8x8xi1>, vector<8x8xi32>
    %cst_6 = arith.constant dense<2147483647> : vector<8xi32>
    %37 = vector.multi_reduction <minsi>, %36, %cst_6 [1] : vector<8x8xi32> to vector<8xi32>
    %38 = vector.shape_cast %37 : vector<8xi32> to vector<8x1xi32>
    %39 = vector.broadcast %38 : vector<8x1xi32> to vector<8x8xi32>
    %40 = arith.cmpi eq, %36, %39 : vector<8x8xi32>
    %41 = arith.extui %40 : vector<8x8xi1> to vector<8x8xi32>
    %42 = arith.sitofp %41 : vector<8x8xi32> to vector<8x8xf32>
    %c2147483647_i32_7 = arith.constant 2147483647 : i32
    %43 = vector.broadcast %c2147483647_i32_7 : i32 to vector<8x8xi32>
    %44 = arith.select %40, %43, %36 : vector<8x8xi1>, vector<8x8xi32>
    %cst_8 = arith.constant dense<2147483647> : vector<8xi32>
    %45 = vector.multi_reduction <minsi>, %44, %cst_8 [1] : vector<8x8xi32> to vector<8xi32>
    %46 = vector.shape_cast %45 : vector<8xi32> to vector<8x1xi32>
    %47 = vector.broadcast %46 : vector<8x1xi32> to vector<8x8xi32>
    %48 = arith.cmpi eq, %44, %47 : vector<8x8xi32>
    %49 = arith.extui %48 : vector<8x8xi1> to vector<8x8xi32>
    %50 = arith.sitofp %49 : vector<8x8xi32> to vector<8x8xf32>
    %c2147483647_i32_9 = arith.constant 2147483647 : i32
    %51 = vector.broadcast %c2147483647_i32_9 : i32 to vector<8x8xi32>
    %52 = arith.select %48, %51, %44 : vector<8x8xi1>, vector<8x8xi32>
    %cst_10 = arith.constant dense<2147483647> : vector<8xi32>
    %53 = vector.multi_reduction <minsi>, %52, %cst_10 [1] : vector<8x8xi32> to vector<8xi32>
    %54 = vector.shape_cast %53 : vector<8xi32> to vector<8x1xi32>
    %55 = vector.broadcast %54 : vector<8x1xi32> to vector<8x8xi32>
    %56 = arith.cmpi eq, %52, %55 : vector<8x8xi32>
    %57 = arith.extui %56 : vector<8x8xi1> to vector<8x8xi32>
    %58 = arith.sitofp %57 : vector<8x8xi32> to vector<8x8xf32>
    %59 = arith.cmpi eq, %14, %18 : vector<8x8xi32>
    %60 = arith.extui %59 : vector<8x8xi1> to vector<8x8xi32>
    %61 = arith.sitofp %60 : vector<8x8xi32> to vector<8x8xf32>
    %cst_11 = arith.constant 0.000000e+00 : f32
    %62 = vector.broadcast %cst_11 : f32 to vector<8x8xf32>
    %63 = arith.subf %62, %61 : vector<8x8xf32>
    %64 = tpu.concatenate %34, %42, %50, %58, %63 in 1 : vector<8x8xf32>, vector<8x8xf32>, vector<8x8xf32>, vector<8x8xf32>, vector<8x8xf32> -> vector<8x40xf32>
    %c0_12 = arith.constant 0 : index
    %c0_13 = arith.constant 0 : index
    %65 = vector.load %arg3[%c0_12, %c0_13] : memref<40x32xf32, #tpu.memory_space<vmem>>, vector<40x32xf32>
    %cst_14 = arith.constant dense<0.000000e+00> : vector<8x32xf32>
    %66 = tpu.matmul %64, %65, %cst_14 {dimension_numbers = #tpu.dot_dimension_numbers<[1], [0], [0], [1], [0, 0, 1, 1], [], []>} : vector<8x40xf32>, vector<40x32xf32>, vector<8x32xf32> -> vector<8x32xf32>
    %c0_15 = arith.constant 0 : index
    %c0_16 = arith.constant 0 : index
    %67 = vector.load %arg4[%c0_15, %c0_16] : memref<1x32xf32, #tpu.memory_space<vmem>>, vector<1x32xf32>
    %68 = vector.broadcast %67 : vector<1x32xf32> to vector<8x32xf32>
    %69 = arith.addf %66, %68 : vector<8x32xf32>
    %cst_17 = arith.constant 0.000000e+00 : f32
    %70 = vector.broadcast %cst_17 : f32 to vector<8x32xf32>
    %71 = arith.maximumf %69, %70 : vector<8x32xf32>
    %c0_18 = arith.constant 0 : index
    %c0_19 = arith.constant 0 : index
    %72 = vector.load %arg5[%c0_18, %c0_19] : memref<8x32xf32, #tpu.memory_space<vmem>>, vector<8x32xf32>
    tpu.vector_store %arg5[%c0_18, %c0_19], %71 {strides = array<i32>} : memref<8x32xf32, #tpu.memory_space<vmem>>, vector<8x32xf32>,
    return
  }
  func.func @transform_0(%arg0: i32) -> (i32, i32) {
    %c0_i32 = arith.constant 0 : i32
    %c0_i32_0 = arith.constant 0 : i32
    %c0_i32_1 = arith.constant 0 : i32
    return %c0_i32, %c0_i32_0 : i32, i32
  }
  func.func @transform_1(%arg0: i32) -> (i32, i32) {
    %c0_i32 = arith.constant 0 : i32
    %c0_i32_0 = arith.constant 0 : i32
    return %arg0, %c0_i32 : i32, i32
  }
  func.func @transform_2(%arg0: i32) -> (i32, i32) {
    %c0_i32 = arith.constant 0 : i32
    %c0_i32_0 = arith.constant 0 : i32
    %c0_i32_1 = arith.constant 0 : i32
    return %c0_i32, %c0_i32_0 : i32, i32
  }
  func.func @transform_3(%arg0: i32) -> (i32, i32) {
    %c0_i32 = arith.constant 0 : i32
    %c0_i32_0 = arith.constant 0 : i32
    %c0_i32_1 = arith.constant 0 : i32
    return %c0_i32, %c0_i32_0 : i32, i32
  }
  func.func @transform_4(%arg0: i32) -> (i32, i32) {
    %c0_i32 = arith.constant 0 : i32
    %c0_i32_0 = arith.constant 0 : i32
    return %arg0, %c0_i32 : i32, i32
  }
}

</mosaic_0001>

<llo_original>
// kernel: tpu_custom_call.1
$region0: #{tpu_custom_call.1}
  #allocation0 [shape = 'u32[]', space=smem, size = 0x4, offset = 0x4, fixed_abs, tag = 'smem constant byte address 0x4 - core index']
  #allocation1 [shape = 'u32[144,128]{1,0:T(1,128)}', space=vmem, size = 0x12000, scoped, tag = 'internal scratch']
  %s0 = inlined_call_operand.vmem [shape: f32[2,8], index: 0, kind: input, shape index: {}]
  %s1 = inlined_call_operand.vmem [shape: f32[8,2], index: 1, kind: input, shape index: {}]
  %s2 = inlined_call_operand.vmem [shape: f32[40,32], index: 2, kind: input, shape index: {}]
  %s3 = inlined_call_operand.vmem [shape: f32[1,32], index: 3, kind: input, shape index: {}]
  %s4 = inlined_call_operand.hbm [shape: f32[8,32], index: 4, kind: output, shape index: {}]
  %s5 = sld [smem:[#allocation0]]
  $region26: #{tpu_custom_call.1} parent=0
    _
  %s7 = ssub.s32 1, %s5
  %s8 = scalar_select 0, %s7, %s5
  $region1: #{tpu_custom_call.1} parent=0
    #allocation2 [shape = 'u8[4096]{0}', space=vmem, size = 0x1000, scoped, tag = 'output window, operand 0, single buffered']
    #allocation3 [shape = 's32[1]{0}', space=sflag, size = 0x4, scoped, tag = 'scoped memory for tpu_custom_call.1']
    %9 = vsyncpa [#allocation3], 0
    // Predicated region
    $region2: #{tpu_custom_call.1} parent=1 // pred_check
      _
    $region3: #{tpu_custom_call.1} parent=1 // pred_check_branch
      %11 = sbr.rel (0) target = $region5
    $region4: #{tpu_custom_call.1} parent=1 // pred_region
      _
    $region5: #{tpu_custom_call.1} parent=1 // pred_fallthru
      _
    // Predicated region
    $region6: #{tpu_custom_call.1} parent=1 // pred_check
      _
    $region7: #{tpu_custom_call.1} parent=1 // pred_check_branch
      %13 = sbr.rel (0) target = $region9
    $region8: #{tpu_custom_call.1} parent=1 // pred_region
      _
    $region9: #{tpu_custom_call.1} parent=1 // pred_fallthru
      _
    // Predicated region
    $region10: #{tpu_custom_call.1} parent=1 // pred_check
      _
    $region11: #{tpu_custom_call.1} parent=1 // pred_check_branch
      %15 = sbr.rel (0) target = $region13
    $region12: #{tpu_custom_call.1} parent=1 // pred_region
      _
    $region13: #{tpu_custom_call.1} parent=1 // pred_fallthru
      _
    // Predicated region
    $region14: #{tpu_custom_call.1} parent=1 // pred_check
      _
    $region15: #{tpu_custom_call.1} parent=1 // pred_check_branch
      %17 = sbr.rel (0) target = $region17
    $region16: #{tpu_custom_call.1} parent=1 // pred_region
      _
    $region17: #{tpu_custom_call.1} parent=1 // pred_fallthru
      _
    %v18 = vld [vmem:[%s0] sm:$0x1]
    %v19 = vld [vmem:[%s0 + $0x1] sm:$0x1]
    %v20 = vld [vmem:[%s1] sm:$0xff]
    %v21 = vlaneseq
    %v22 = vshrl.u32 %v21, 7
    %v23 = vsub.s32 0, %v22
    %v24 = vrot.slane %v18, %v23
    %26 = vset.pattern.permute.xlu0 0
    %27 = vperm.xlu0 %26, %v20
    %v28 = vpop.permute.xlu0 %27
    %v30 = vsub.f32 %v24, %v28
    %v31 = vlaneseq
    %v32 = vshrl.u32 %v31, 7
    %v33 = vsub.s32 0, %v32
    %v34 = vrot.slane %v19, %v33
    %35 = vset.pattern.permute.xlu0 1
    %36 = vperm.xlu0 %35, %v20
    %v37 = vpop.permute.xlu0 %36
    %v39 = vsub.f32 %v34, %v37
    %v40 = vmul.f32 %v30, %v30
    %v41 = vmul.f32 %v39, %v39
    %v42 = vadd.f32 %v40, %v41
    %v43 = vlaneseq
    %v44 = vand.u32 %v43, 127
    %s45 = smul.u32 0, 8
    %v46 = vlaneseq
    %v47 = vshrl.u32 %v46, 7
    %v48 = vstv %s45
    %v49 = vadd.s32 %v48, %v47
    %v51 = vand.u32 %v42, 4294967288
    %v52 = vor.u32 %v51, %v44
    %vm53 = vcmp.eq.s32.totalorder %v49, %v44
    %vm54 = vcmp.ge.s32.totalorder %v44, 8
    %vm55 = vmor %vm53, %vm54
    %v56 = vsel %vm55, 2147483647, %v52
    %vm57 = vcmask 64512
    %v58 = vsel %vm57, %v56, 2147483647
    %v59 = vand.u32 %v58, 65535
    %v60 = vshra.s32 %v58, 16
    %v61 = vcvt.s32.f32 %v59
    %v62 = vcvt.s32.f32 %v60
    %63 = vmin.xlane.f32.xlu0 %v62
    %v64 = vpop.xlane.xlu0 %63
    %vm65 = vcmp.eq.f32.partialorder %v62, %v64
    %v66 = vsel %vm65, %v61, inf
    %67 = vmin.xlane.f32.xlu0 %v66
    %v68 = vpop.xlane.xlu0 %67
    %v69 = vcvt.f32.s32 %v68
    %v70 = vcvt.f32.s32 %v64
    %v71 = vshll.u32 %v70, 16
    %v72 = vadd.s32 %v71, %v69
    %vm73 = vcmp.eq.s32.totalorder %v56, %v72
    %v74 = vsel %vm73, 1, 0
    %v75 = vcvt.s32.f32 %v74
    %v76 = vsel %vm73, 2147483647, %v56
    %v77 = vsel %vm57, %v76, 2147483647
    %v78 = vand.u32 %v77, 65535
    %v79 = vshra.s32 %v77, 16
    %v80 = vcvt.s32.f32 %v78
    %v81 = vcvt.s32.f32 %v79
    %82 = vmin.xlane.f32.xlu0 %v81
    %v83 = vpop.xlane.xlu0 %82
    %vm84 = vcmp.eq.f32.partialorder %v81, %v83
    %v85 = vsel %vm84, %v80, inf
    %86 = vmin.xlane.f32.xlu0 %v85
    %v87 = vpop.xlane.xlu0 %86
    %v88 = vcvt.f32.s32 %v87
    %v89 = vcvt.f32.s32 %v83
    %v90 = vshll.u32 %v89, 16
    %v91 = vadd.s32 %v90, %v88
    %vm92 = vcmp.eq.s32.totalorder %v76, %v91
    %v93 = vsel %vm92, 1, 0
    %v94 = vcvt.s32.f32 %v93
    %v95 = vsel %vm92, 2147483647, %v76
    %v96 = vsel %vm57, %v95, 2147483647
    %v97 = vand.u32 %v96, 65535
    %v98 = vshra.s32 %v96, 16
    %v99 = vcvt.s32.f32 %v97
    %v100 = vcvt.s32.f32 %v98
    %101 = vmin.xlane.f32.xlu0 %v100
    %v102 = vpop.xlane.xlu0 %101
    %vm103 = vcmp.eq.f32.partialorder %v100, %v102
    %v104 = vsel %vm103, %v99, inf
    %105 = vmin.xlane.f32.xlu0 %v104
    %v106 = vpop.xlane.xlu0 %105
    %v107 = vcvt.f32.s32 %v106
    %v108 = vcvt.f32.s32 %v102
    %v109 = vshll.u32 %v108, 16
    %v110 = vadd.s32 %v109, %v107
    %vm111 = vcmp.eq.s32.totalorder %v95, %v110
    %v112 = vsel %vm111, 1, 0
    %v113 = vcvt.s32.f32 %v112
    %v114 = vsel %vm111, 2147483647, %v95
    %v115 = vsel %vm57, %v114, 2147483647
    %v116 = vand.u32 %v115, 65535
    %v117 = vshra.s32 %v115, 16
    %v118 = vcvt.s32.f32 %v116
    %v119 = vcvt.s32.f32 %v117
    %120 = vmin.xlane.f32.xlu0 %v119
    %v121 = vpop.xlane.xlu0 %120
    %vm122 = vcmp.eq.f32.partialorder %v119, %v121
    %v123 = vsel %vm122, %v118, inf
    %124 = vmin.xlane.f32.xlu0 %v123
    %v125 = vpop.xlane.xlu0 %124
    %v126 = vcvt.f32.s32 %v125
    %v127 = vcvt.f32.s32 %v121
    %v128 = vshll.u32 %v127, 16
    %v129 = vadd.s32 %v128, %v126
    %vm130 = vcmp.eq.s32.totalorder %v114, %v129
    %v131 = vsel %vm130, 1, 0
    %v132 = vcvt.s32.f32 %v131
    %vm133 = vcmp.eq.s32.totalorder %v44, %v49
    %v134 = vsel %vm133, 1, 0
    %v135 = vcvt.s32.f32 %v134
    %v136 = vsub.f32 0.0, %v135
    %138 = vrot.lane.b32.xlu0 %v94, 8
    %v139 = vpop.permute.xlu0 %138
    %142 = vrot.lane.b32.xlu0 %v113, 16
    %v143 = vpop.permute.xlu0 %142
    %146 = vrot.lane.b32.xlu0 %v132, 24
    %v147 = vpop.permute.xlu0 %146
    %150 = vrot.lane.b32.xlu0 %v136, 32
    %v151 = vpop.permute.xlu0 %150
    %v153 = vsel %vm57, %v75, %v139
    %vm154 = vcmask 130048
    %v155 = vsel %vm154, %v153, %v143
    %vm156 = vcmask 195584
    %v157 = vsel %vm156, %v155, %v147
    %vm158 = vcmask 261120
    %v159 = vsel %vm158, %v157, %v151
    %v160 = vld [vmem:[%s2] sm:$0xff]
    %v161 = vld [vmem:[%s2 + $0x8] sm:$0xff]
    %v162 = vld [vmem:[%s2 + $0x10] sm:$0xff]
    %v163 = vld [vmem:[%s2 + $0x18] sm:$0xff]
    %v164 = vld [vmem:[%s2 + $0x20] sm:$0xff]
    %v165 = vld [vmem:[%s3] sm:$0x1]
    %v167 = vlaneseq
    %v168 = vshrl.u32 %v167, 7
    %v169 = vsub.s32 0, %v168
    %v170 = vrot.slane %v165, %v169
    %vm172 = vcmask 326656
    %v174 = vsel %vm172, %v159, 0
    %176 = vmatprep.subr.mxu0 0.0
    %177 = vmatpush1.msra.mxu0 0.0
    %178 = vmatprep.subr.mxu0 0.0
    %179 = vmatpush1.msra.mxu0 0.0
    %180 = vmatprep.subr.mxu0 0.0
    %181 = vmatpush1.msra.mxu0 0.0
    %182 = vmatprep.subr.mxu0 0.0
    %183 = vmatpush1.msra.mxu0 0.0
    %184 = vmatprep.subr.mxu0 0.0
    %185 = vmatpush1.msra.mxu0 0.0
    %186 = vmatprep.subr.mxu0 0.0
    %187 = vmatpush1.msra.mxu0 0.0
    %188 = vmatprep.subr.mxu0 0.0
    %189 = vmatpush1.msra.mxu0 0.0
    %190 = vmatprep.subr.mxu0 0.0
    %191 = vmatpush1.msra.mxu0 0.0
    %192 = vmatprep.subr.mxu0 0.0
    %193 = vmatpush1.msra.mxu0 0.0
    %194 = vmatprep.subr.mxu0 0.0
    %195 = vmatpush1.msra.mxu0 0.0
    %196 = vmatprep.subr.mxu0 0.0
    %197 = vmatpush1.msra.mxu0 0.0
    %198 = vmatprep.subr.mxu0 0.0
    %199 = vmatpush1.msra.mxu0 %v164
    %200 = vmatprep.subr.mxu0 0.0
    %201 = vmatpush1.msra.mxu0 %v163
    %202 = vmatprep.subr.mxu0 0.0
    %203 = vmatpush1.msra.mxu0 %v162
    %204 = vmatprep.subr.mxu0 0.0
    %205 = vmatpush1.msra.mxu0 %v161
    %206 = vmatprep.subr.mxu0 0.0
    %207 = vmatpush1.msra.mxu0 %v160
    %208 = vmatprep.subr.mxu0 0.0
    %209 = vmatpush2.msra.mxu0 0.0
    %210 = vmatprep.subr.mxu0 0.0
    %211 = vmatpush2.msra.mxu0 0.0
    %212 = vmatprep.subr.mxu0 0.0
    %213 = vmatpush2.msra.mxu0 0.0
    %214 = vmatprep.subr.mxu0 0.0
    %215 = vmatpush2.msra.mxu0 0.0
    %216 = vmatprep.subr.mxu0 0.0
    %217 = vmatpush2.msra.mxu0 0.0
    %218 = vmatprep.subr.mxu0 0.0
    %219 = vmatpush2.msra.mxu0 0.0
    %220 = vmatprep.subr.mxu0 0.0
    %221 = vmatpush2.msra.mxu0 0.0
    %222 = vmatprep.subr.mxu0 0.0
    %223 = vmatpush2.msra.mxu0 0.0
    %224 = vmatprep.subr.mxu0 0.0
    %225 = vmatpush2.msra.mxu0 0.0
    %226 = vmatprep.subr.mxu0 0.0
    %227 = vmatpush2.msra.mxu0 0.0
    %228 = vmatprep.subr.mxu0 0.0
    %229 = vmatpush2.msra.mxu0 0.0
    %230 = vmatprep.subr.mxu0 0.0
    %231 = vmatpush2.msra.mxu0 0.0
    %232 = vmatprep.subr.mxu0 0.0
    %233 = vmatpush2.msra.mxu0 0.0
    %234 = vmatprep.subr.mxu0 0.0
    %235 = vmatpush2.msra.mxu0 0.0
    %236 = vmatprep.subr.mxu0 0.0
    %237 = vmatpush2.msra.mxu0 0.0
    %238 = vmatprep.subr.mxu0 0.0
    %239 = vmatpush2.msra.mxu0 0.0
    %240 = vmatprep.mubr.f32.mxu0 0.0
    %241 = vmatmul.mubr.f32.gmra.mxu0 %v174
    %v242 = vpop.f32.mrf.mxu0
    %v243 = vadd.f32 %v170, %v242
    %v244 = vpop.f32.mrf.mxu0
    %245 = vdwg.mxu0
    %v246 = vmax.f32 %v243, 0.0
    %247 = vst.msk [vmem:[#allocation2] sm:$0xff] %vm158, %v246
    // Predicated region
    $region18: #{tpu_custom_call.1} parent=1 // pred_check
      _
    $region19: #{tpu_custom_call.1} parent=1 // pred_check_branch
      %249 = sbr.rel (0) target = $region21
    $region20: #{tpu_custom_call.1} parent=1 // pred_region
      %s251 = ssub.s32 128, 128
      %252 = vsyncadd [#allocation3], %s251
      %s254 = sshll.u32 [#allocation2], 4
      %s255 = int_to_ptr.vmem [resolvable:$true] %s254
      %257 = dma.vmem_to_hbm [thread:$0]  %s255, 128, %s4, [#allocation3]
    $region21: #{tpu_custom_call.1} parent=1 // pred_fallthru
      _
    // Predicated region
    $region22: #{tpu_custom_call.1} parent=1 // pred_check
      _
    $region23: #{tpu_custom_call.1} parent=1 // pred_check_branch
      %259 = sbr.rel (0) target = $region25
    $region24: #{tpu_custom_call.1} parent=1 // pred_region
      %260 = dma.done [#allocation3], 128
    $region25: #{tpu_custom_call.1} parent=1 // pred_fallthru
      _
    %261 = vsyncpa [#allocation3], 1

</llo_original>
